<compile_context>
chip_gen: v6e
topology: v6e:2x2x1
jax: 0.10.0
libtpu: 0.0.40
codegen_flags: <defaults>
</compile_context>

<pallas_src>
import jax
import jax.numpy as jnp
from jax.experimental import pallas as pl
from jax.experimental.pallas import tpu as pltpu

BF16_SUBLANE = 16
MATMUL_DTYPE = jnp.bfloat16   # MXU operand dtype; accumulation / elementwise stay f32.


def _cdiv(a, b):
    return -(-a // b)


def _round_up(x, m):
    return _cdiv(x, m) * m


def _pad_feature(v):
    # 128-lane padding; prefer 256-aligned tiles for the v6e/v7x 256x256 MXU once the
    # dim is big enough to fill them (v5e's 128x128 MXU is fine either way).
    return 128 if v <= 128 else _round_up(v, 256)


# ------------------------------ Pallas kernel ------------------------------

def _swiglu_kernel(x_ref, wa_ref, ba_ref, wb_ref, bb_ref, wout_ref, bout_ref,
                   o_ref, acc_ref):
    # x_ref:    (tm, d)    bf16
    # wa_ref:   (d, te)    bf16     wb_ref: (d, te) bf16
    # ba_ref:   (1, te)    f32      bb_ref: (1, te) f32
    # wout_ref: (te, Np)   bf16
    # bout_ref: (1, Np)    f32
    # o_ref:    (tm, Np)   f32
    # acc_ref:  (tm, Np)   f32 VMEM scratch (resident across the E-reduction axis)
    e_idx = pl.program_id(1)

    @pl.when(e_idx == 0)
    def _():
        acc_ref[...] = jnp.zeros_like(acc_ref)

    x = x_ref[...]
    ga = jnp.dot(x, wa_ref[...], preferred_element_type=jnp.float32) + ba_ref[...]
    gb = jnp.dot(x, wb_ref[...], preferred_element_type=jnp.float32) + bb_ref[...]
    c = ga * (gb * jax.nn.sigmoid(gb))        # a * SiLU(b); f32 gating (v5e-safe)
    acc_ref[...] += jnp.dot(c.astype(wout_ref.dtype), wout_ref[...],
                            preferred_element_type=jnp.float32)

    @pl.when(e_idx == pl.num_programs(1) - 1)
    def _():
        o_ref[...] = acc_ref[...] + bout_ref[...]


# ------------------------------ parameters ------------------------------

def init_swiglu_params(key, input_dim, output_dim=None, expansion_factor=2):
    """Matches nn.Linear default init (U(-1/sqrt(fan_in), 1/sqrt(fan_in)))."""
    output_dim = input_dim if output_dim is None else output_dim
    e = input_dim * expansion_factor
    k_iw, k_ib, k_ow, k_ob = jax.random.split(key, 4)
    k_in = float(input_dim) ** -0.5
    k_out = float(e) ** -0.5
    return {
        "w_in": jax.random.uniform(k_iw, (input_dim, 2 * e), jnp.float32, -k_in, k_in),
        "b_in": jax.random.uniform(k_ib, (2 * e,), jnp.float32, -k_in, k_in),
        "w_out": jax.random.uniform(k_ow, (e, output_dim), jnp.float32, -k_out, k_out),
        "b_out": jax.random.uniform(k_ob, (output_dim,), jnp.float32, -k_out, k_out),
    }


def prepare_swiglu_params(p):
    """Split W_in into gate halves, pad feature dims once, cast MXU operands to bf16."""
    d, two_e = p["w_in"].shape
    e = two_e // 2
    n = p["w_out"].shape[1]
    ep, np_ = _pad_feature(e), _pad_feature(n)

    # E-tile size (reduction grid axis).  Must divide ep; 256/512-wide tiles fill the MXU.
    if ep <= 512:
        te = ep
    elif ep % 512 == 0:
        te = 512
    else:
        te = 256

    wa = jnp.pad(p["w_in"][:, :e], ((0, 0), (0, ep - e))).astype(MATMUL_DTYPE)
    wb = jnp.pad(p["w_in"][:, e:], ((0, 0), (0, ep - e))).astype(MATMUL_DTYPE)
    ba = jnp.pad(p["b_in"][:e], (0, ep - e)).reshape(1, ep).astype(jnp.float32)
    bb = jnp.pad(p["b_in"][e:], (0, ep - e)).reshape(1, ep).astype(jnp.float32)
    wout = jnp.pad(p["w_out"], ((0, ep - e), (0, np_ - n))).astype(MATMUL_DTYPE)
    bout = jnp.pad(p["b_out"], (0, np_ - n)).reshape(1, np_).astype(jnp.float32)

    # Padded lanes are mathematically inert: zero W_a/W_b columns & zero biases give
    # ga = gb = 0 there, SiLU(0) = 0, and the matching W_out rows are zero anyway.
    return {"w_a": wa, "w_b": wb, "b_a": ba, "b_b": bb, "w_out": wout, "b_out": bout,
            "dims": (int(d), int(e), int(n), int(ep), int(np_), int(te))}


# ------------------------------ wrapper ------------------------------

def swiglu_forward(x, pp, *, tm_max=256):
    """SwiGlu forward on x[..., d] -> [..., n]. `pp` from prepare_swiglu_params."""
    d, e, n, ep, np_, te = pp["dims"]
    assert x.shape[-1] == d
    lead = x.shape[:-1]
    m = 1
    for s in lead:
        m *= int(s)

    # Single cast straight to the MXU operand dtype; feature dim left unpadded
    # (block uses the full last dim; Mosaic pads K internally for the matmul).
    xm = x.reshape(m, d).astype(MATMUL_DTYPE)

    # Adaptive row tile: multiple of 16 (bf16 sublane packing), sized so row padding
    # is bounded instead of rounding m up to tm_max.
    grid_m_target = max(1, _cdiv(m, tm_max))
    tm = _round_up(_cdiv(m, grid_m_target), BF16_SUBLANE)
    grid_m = _cdiv(m, tm)
    mp = grid_m * tm
    if mp != m:
        xm = jnp.pad(xm, ((0, mp - m), (0, 0)))   # pad only the ragged last row tile

    grid_e = ep // te

    # Constant-index blocks need no prefetch buffer; streamed E-tiles get depth-2.
    w_mode = pl.Buffered(1) if grid_e == 1 else pl.Buffered(2)
    const_mode = pl.Buffered(1)

    # VMEM budget: buffers at their actual depth + f32 accumulator + live intermediates.
    wbuf = 1 if grid_e == 1 else 2
    vmem_est = (
        2 * tm * d * 2                    # x (double-buffered bf16)
        + 2 * wbuf * d * te * 2           # W_a + W_b
        + 2 * wbuf * te * 4               # b_a + b_b (f32)
        + wbuf * te * np_ * 2             # W_out
        + np_ * 4                         # b_out
        + 2 * tm * np_ * 4                # output (double-buffered f32)
        + tm * np_ * 4                    # accumulator scratch
        + 4 * tm * te * 4                 # ga / gb / c f32 intermediates
    )
    vmem_limit = int(min(max(int(vmem_est * 1.5) + (2 << 20), 32 << 20), 64 << 20))

    weight_bytes = (2 * d * ep + ep * np_) * 2 + (2 * ep + np_) * 4
    weight_passes = grid_m if grid_e > 1 else 1   # streamed weights re-fetched per row tile
    cost = pl.CostEstimate(
        flops=2 * m * (d * 2 * ep + ep * np_),
        transcendentals=m * ep,
        bytes_accessed=m * d * 2 + m * np_ * 4 + weight_bytes * weight_passes,
    )

    out = pl.pallas_call(
        _swiglu_kernel,
        out_shape=jax.ShapeDtypeStruct((mp, np_), jnp.float32),
        grid=(grid_m, grid_e),
        in_specs=[
            pl.BlockSpec((tm, d), lambda i, k: (i, 0)),
            pl.BlockSpec((d, te), lambda i, k: (0, k), pipeline_mode=w_mode),
            pl.BlockSpec((1, te), lambda i, k: (0, k), pipeline_mode=w_mode),
            pl.BlockSpec((d, te), lambda i, k: (0, k), pipeline_mode=w_mode),
            pl.BlockSpec((1, te), lambda i, k: (0, k), pipeline_mode=w_mode),
            pl.BlockSpec((te, np_), lambda i, k: (k, 0), pipeline_mode=w_mode),
            pl.BlockSpec((1, np_), lambda i, k: (0, 0), pipeline_mode=const_mode),
        ],
        out_specs=pl.BlockSpec((tm, np_), lambda i, k: (i, 0)),
        scratch_shapes=[pltpu.VMEM((tm, np_), jnp.float32)],
        compiler_params=pltpu.CompilerParams(
            dimension_semantics=("parallel", "arbitrary"),
            vmem_limit_bytes=vmem_limit,
        ),
        cost_estimate=cost,
    )(xm, pp["w_a"], pp["b_a"], pp["w_b"], pp["b_b"], pp["w_out"], pp["b_out"])

    return out[:m, :n].reshape(*lead, n)


def swiglu_reference(x, p):
    """Pure-JAX f32 reference matching the PyTorch module."""
    y = x @ p["w_in"] + p["b_in"]
    a, b = jnp.split(y, 2, axis=-1)
    c = a * (b * jax.nn.sigmoid(b))
    return c @ p["w_out"] + p["b_out"]


# ------------------------------ main ------------------------------

if __name__ == "__main__":
    key = jax.random.PRNGKey(0)
    k_x, k_p = jax.random.split(key)

    # SwiGlu(input_dim=80, expansion_factor=2) -> output_dim=80 (module default).
    B, T, D = 2, 8, 80
    params = init_swiglu_params(k_p, D, output_dim=None, expansion_factor=2)
    prepped = prepare_swiglu_params(params)          # pad + bf16-cast once, outside jit

    x = jax.random.normal(k_x, (B, T, D), jnp.float32)

    fwd = jax.jit(lambda xx: swiglu_forward(xx, prepped))
    y = jax.block_until_ready(fwd(x))

    y_ref = swiglu_reference(x, params)

    assert y.shape == (B, T, D) and y.dtype == jnp.float32
    assert bool(jnp.all(jnp.isfinite(y)))
    max_err = float(jnp.max(jnp.abs(y - y_ref)))
    assert max_err < 3e-2, f"max abs err vs f32 reference: {max_err}"  # bf16 MXU operands
    print("KERNEL_OK")
</pallas_src>

<mosaic_0001>
module attributes {stable_mosaic.version = 11 : i64} {
  func.func @_swiglu_kernel(%arg0: i32, %arg1: i32, %arg2: memref<16x80xbf16, #tpu.memory_space<vmem>>, %arg3: memref<80x256xbf16, #tpu.memory_space<vmem>>, %arg4: memref<1x256xf32, #tpu.memory_space<vmem>>, %arg5: memref<80x256xbf16, #tpu.memory_space<vmem>>, %arg6: memref<1x256xf32, #tpu.memory_space<vmem>>, %arg7: memref<256x128xbf16, #tpu.memory_space<vmem>>, %arg8: memref<1x128xf32, #tpu.memory_space<vmem>>, %arg9: memref<16x128xf32, #tpu.memory_space<vmem>>, %arg10: memref<16x128xf32, #tpu.memory_space<vmem>>) attributes {dimension_semantics = [#tpu.dimension_semantics<parallel>, #tpu.dimension_semantics<arbitrary>], iteration_bounds = array<i64: 1, 1>, scalar_prefetch = 0 : i64, scratch_operands = 1 : i64, tpu.core_type = #tpu.core_type<tc>, window_params = [{transform_indices = @transform_0, window_bounds = array<i64: 16, 80>}, {pipeline_mode = #tpu.pipeline_mode<synchronous>, transform_indices = @transform_1, window_bounds = array<i64: 80, 256>}, {pipeline_mode = #tpu.pipeline_mode<synchronous>, transform_indices = @transform_2, window_bounds = array<i64: 1, 256>}, {pipeline_mode = #tpu.pipeline_mode<synchronous>, transform_indices = @transform_3, window_bounds = array<i64: 80, 256>}, {pipeline_mode = #tpu.pipeline_mode<synchronous>, transform_indices = @transform_4, window_bounds = array<i64: 1, 256>}, {pipeline_mode = #tpu.pipeline_mode<synchronous>, transform_indices = @transform_5, window_bounds = array<i64: 256, 128>}, {pipeline_mode = #tpu.pipeline_mode<synchronous>, transform_indices = @transform_6, window_bounds = array<i64: 1, 128>}, {transform_indices = @transform_7, window_bounds = array<i64: 16, 128>}]} {
    %c0_i32 = arith.constant 0 : i32
    %0 = arith.cmpi eq, %arg1, %c0_i32 : i32
    %1 = arith.extui %0 : i1 to i32
    %c0_i32_0 = arith.constant 0 : i32
    %2 = arith.cmpi ne, %1, %c0_i32_0 : i32
    scf.if %2 {
      %cst_21 = arith.constant 0.000000e+00 : f32
      %30 = vector.broadcast %cst_21 : f32 to vector<16x128xf32>
      %c0_22 = arith.constant 0 : index
      %c0_23 = arith.constant 0 : index
      %31 = vector.load %arg10[%c0_22, %c0_23] : memref<16x128xf32, #tpu.memory_space<vmem>>, vector<16x128xf32>
      tpu.vector_store %arg10[%c0_22, %c0_23], %30 {strides = array<i32>} : memref<16x128xf32, #tpu.memory_space<vmem>>, vector<16x128xf32>,
    } else {
    }
    %c0 = arith.constant 0 : index
    %c0_1 = arith.constant 0 : index
    %3 = vector.load %arg2[%c0, %c0_1] : memref<16x80xbf16, #tpu.memory_space<vmem>>, vector<16x80xbf16>
    %c0_2 = arith.constant 0 : index
    %c0_3 = arith.constant 0 : index
    %4 = vector.load %arg3[%c0_2, %c0_3] : memref<80x256xbf16, #tpu.memory_space<vmem>>, vector<80x256xbf16>
    %cst = arith.constant dense<0.000000e+00> : vector<16x256xf32>
    %5 = tpu.matmul %3, %4, %cst {dimension_numbers = #tpu.dot_dimension_numbers<[1], [0], [0], [1], [0, 0, 1, 1], [], []>} : vector<16x80xbf16>, vector<80x256xbf16>, vector<16x256xf32> -> vector<16x256xf32>
    %c0_4 = arith.constant 0 : index
    %c0_5 = arith.constant 0 : index
    %6 = vector.load %arg4[%c0_4, %c0_5] : memref<1x256xf32, #tpu.memory_space<vmem>>, vector<1x256xf32>
    %7 = vector.broadcast %6 : vector<1x256xf32> to vector<16x256xf32>
    %8 = arith.addf %5, %7 : vector<16x256xf32>
    %c0_6 = arith.constant 0 : index
    %c0_7 = arith.constant 0 : index
    %9 = vector.load %arg5[%c0_6, %c0_7] : memref<80x256xbf16, #tpu.memory_space<vmem>>, vector<80x256xbf16>
    %cst_8 = arith.constant dense<0.000000e+00> : vector<16x256xf32>
    %10 = tpu.matmul %3, %9, %cst_8 {dimension_numbers = #tpu.dot_dimension_numbers<[1], [0], [0], [1], [0, 0, 1, 1], [], []>} : vector<16x80xbf16>, vector<80x256xbf16>, vector<16x256xf32> -> vector<16x256xf32>
    %c0_9 = arith.constant 0 : index
    %c0_10 = arith.constant 0 : index
    %11 = vector.load %arg6[%c0_9, %c0_10] : memref<1x256xf32, #tpu.memory_space<vmem>>, vector<1x256xf32>
    %12 = vector.broadcast %11 : vector<1x256xf32> to vector<16x256xf32>
    %13 = arith.addf %10, %12 : vector<16x256xf32>
    %14 = arith.negf %13 : vector<16x256xf32>
    %15 = math.exp %14 : vector<16x256xf32>
    %cst_11 = arith.constant 1.000000e+00 : f32
    %16 = vector.broadcast %cst_11 : f32 to vector<16x256xf32>
    %17 = arith.addf %16, %15 : vector<16x256xf32>
    %18 = arith.divf %16, %17 : vector<16x256xf32>
    %19 = arith.mulf %13, %18 : vector<16x256xf32>
    %20 = arith.mulf %8, %19 : vector<16x256xf32>
    %c0_12 = arith.constant 0 : index
    %c0_13 = arith.constant 0 : index
    %21 = vector.load %arg10[%c0_12, %c0_13] : memref<16x128xf32, #tpu.memory_space<vmem>>, vector<16x128xf32>
    %22 = arith.truncf %20 : vector<16x256xf32> to vector<16x256xbf16>
    %c0_14 = arith.constant 0 : index
    %c0_15 = arith.constant 0 : index
    %23 = vector.load %arg7[%c0_14, %c0_15] : memref<256x128xbf16, #tpu.memory_space<vmem>>, vector<256x128xbf16>
    %cst_16 = arith.constant dense<0.000000e+00> : vector<16x128xf32>
    %24 = tpu.matmul %22, %23, %cst_16 {dimension_numbers = #tpu.dot_dimension_numbers<[1], [0], [0], [1], [0, 0, 1, 1], [], []>} : vector<16x256xbf16>, vector<256x128xbf16>, vector<16x128xf32> -> vector<16x128xf32>
    %25 = arith.addf %21, %24 : vector<16x128xf32>
    %c0_17 = arith.constant 0 : index
    %c0_18 = arith.constant 0 : index
    %26 = vector.load %arg10[%c0_17, %c0_18] : memref<16x128xf32, #tpu.memory_space<vmem>>, vector<16x128xf32>
    tpu.vector_store %arg10[%c0_17, %c0_18], %25 {strides = array<i32>} : memref<16x128xf32, #tpu.memory_space<vmem>>, vector<16x128xf32>,
    %c0_i32_19 = arith.constant 0 : i32
    %27 = arith.cmpi eq, %arg1, %c0_i32_19 : i32
    %28 = arith.extui %27 : i1 to i32
    %c0_i32_20 = arith.constant 0 : i32
    %29 = arith.cmpi ne, %28, %c0_i32_20 : i32
    scf.if %29 {
      %c0_21 = arith.constant 0 : index
      %c0_22 = arith.constant 0 : index
      %30 = vector.load %arg10[%c0_21, %c0_22] : memref<16x128xf32, #tpu.memory_space<vmem>>, vector<16x128xf32>
      %c0_23 = arith.constant 0 : index
      %c0_24 = arith.constant 0 : index
      %31 = vector.load %arg8[%c0_23, %c0_24] : memref<1x128xf32, #tpu.memory_space<vmem>>, vector<1x128xf32>
      %32 = vector.broadcast %31 : vector<1x128xf32> to vector<16x128xf32>
      %33 = arith.addf %30, %32 : vector<16x128xf32>
      %c0_25 = arith.constant 0 : index
      %c0_26 = arith.constant 0 : index
      %34 = vector.load %arg9[%c0_25, %c0_26] : memref<16x128xf32, #tpu.memory_space<vmem>>, vector<16x128xf32>
      tpu.vector_store %arg9[%c0_25, %c0_26], %33 {strides = array<i32>} : memref<16x128xf32, #tpu.memory_space<vmem>>, vector<16x128xf32>,
    } else {
    }
    return
  }
  func.func @transform_0(%arg0: i32, %arg1: i32) -> (i32, i32) {
    %c0_i32 = arith.constant 0 : i32
    %c0_i32_0 = arith.constant 0 : i32
    return %arg0, %c0_i32 : i32, i32
  }
  func.func @transform_1(%arg0: i32, %arg1: i32) -> (i32, i32) {
    %c0_i32 = arith.constant 0 : i32
    %c0_i32_0 = arith.constant 0 : i32
    return %c0_i32, %arg1 : i32, i32
  }
  func.func @transform_2(%arg0: i32, %arg1: i32) -> (i32, i32) {
    %c0_i32 = arith.constant 0 : i32
    %c0_i32_0 = arith.constant 0 : i32
    return %c0_i32, %arg1 : i32, i32
  }
  func.func @transform_3(%arg0: i32, %arg1: i32) -> (i32, i32) {
    %c0_i32 = arith.constant 0 : i32
    %c0_i32_0 = arith.constant 0 : i32
    return %c0_i32, %arg1 : i32, i32
  }
  func.func @transform_4(%arg0: i32, %arg1: i32) -> (i32, i32) {
    %c0_i32 = arith.constant 0 : i32
    %c0_i32_0 = arith.constant 0 : i32
    return %c0_i32, %arg1 : i32, i32
  }
  func.func @transform_5(%arg0: i32, %arg1: i32) -> (i32, i32) {
    %c0_i32 = arith.constant 0 : i32
    %c0_i32_0 = arith.constant 0 : i32
    return %arg1, %c0_i32 : i32, i32
  }
  func.func @transform_6(%arg0: i32, %arg1: i32) -> (i32, i32) {
    %c0_i32 = arith.constant 0 : i32
    %c0_i32_0 = arith.constant 0 : i32
    %c0_i32_1 = arith.constant 0 : i32
    return %c0_i32, %c0_i32_0 : i32, i32
  }
  func.func @transform_7(%arg0: i32, %arg1: i32) -> (i32, i32) {
    %c0_i32 = arith.constant 0 : i32
    %c0_i32_0 = arith.constant 0 : i32
    return %arg0, %c0_i32 : i32, i32
  }
}

</mosaic_0001>

<llo_original>
// kernel: _lambda_.1
$region0: #{_lambda_.1}
  #allocation0 [shape = 'u32[]', space=smem, size = 0x4, offset = 0x4, fixed_abs, tag = 'smem constant byte address 0x4 - core index']
  #allocation1 [shape = 'u32[144,128]{1,0:T(1,128)}', space=vmem, size = 0x12000, scoped, tag = 'internal scratch']
  #allocation2 [shape = 'f32[16,128]{1,0:T(8,128)}', space=vmem, size = 0x2000, scoped, tag = 'scratch operand']
  %s0 = inlined_call_operand.vmem [shape: bf16[16,80], index: 0, kind: input, shape index: {}]
  %s1 = inlined_call_operand.hbm [shape: bf16[80,256], index: 1, kind: input, shape index: {}]
  %s2 = inlined_call_operand.vmem [shape: f32[1,256], index: 2, kind: input, shape index: {}]
  %s3 = inlined_call_operand.hbm [shape: bf16[80,256], index: 3, kind: input, shape index: {}]
  %s4 = inlined_call_operand.vmem [shape: f32[1,256], index: 4, kind: input, shape index: {}]
  %s5 = inlined_call_operand.hbm [shape: bf16[256,128], index: 5, kind: input, shape index: {}]
  %s6 = inlined_call_operand.vmem [shape: f32[1,128], index: 6, kind: input, shape index: {}]
  %s7 = inlined_call_operand.vmem [shape: f32[16,128], index: 7, kind: output, shape index: {}]
  %s8 = sld [smem:[#allocation0]]
  $region58: #{_lambda_.1} parent=0
    _
  %s10 = ssub.s32 1, %s8
  %s11 = scalar_select 0, %s10, %s8
  $region1: #{_lambda_.1} parent=0
    #allocation3 [shape = 'u8[40960]{0}', space=vmem, size = 0xa000, scoped, tag = 'input window, operand 1, single buffered']
    #allocation4 [shape = 's32[1]{0}', space=sflag, size = 0x4, scoped, tag = 'scoped memory for _lambda_.1']
    #allocation5 [shape = 'u8[40960]{0}', space=vmem, size = 0xa000, scoped, tag = 'input window, operand 3, single buffered']
    #allocation6 [shape = 's32[1]{0}', space=sflag, size = 0x4, scoped, tag = 'scoped memory for _lambda_.1']
    #allocation7 [shape = 'u8[65536]{0}', space=vmem, size = 0x10000, scoped, tag = 'input window, operand 5, single buffered']
    %12 = vsyncpa [#allocation4], 0
    %13 = vsyncpa [#allocation6], 0
    // Predicated region
    $region2: #{_lambda_.1} parent=1 // pred_check
      _
    $region3: #{_lambda_.1} parent=1 // pred_check_branch
      %15 = sbr.rel (0) target = $region5
    $region4: #{_lambda_.1} parent=1 // pred_region
      _
    $region5: #{_lambda_.1} parent=1 // pred_fallthru
      _
    // Predicated region
    $region6: #{_lambda_.1} parent=1 // pred_check
      _
    $region7: #{_lambda_.1} parent=1 // pred_check_branch
      %17 = sbr.rel (0) target = $region9
    $region8: #{_lambda_.1} parent=1 // pred_region
      %s19 = ssub.s32 1280, 1280
      %20 = vsyncadd [#allocation4], %s19
      %s21 = sshll.u32 [#allocation3], 4
      %s22 = int_to_ptr.vmem [resolvable:$true] %s21
      %27 = dma.hbm_to_vmem [thread:$0]  %s1, 1280, %s22, [#allocation4], 128, 128, 8
    $region9: #{_lambda_.1} parent=1 // pred_fallthru
      _
    // Predicated region
    $region10: #{_lambda_.1} parent=1 // pred_check
      _
    $region11: #{_lambda_.1} parent=1 // pred_check_branch
      %29 = sbr.rel (0) target = $region13
    $region12: #{_lambda_.1} parent=1 // pred_region
      _
    $region13: #{_lambda_.1} parent=1 // pred_fallthru
      _
    // Predicated region
    $region14: #{_lambda_.1} parent=1 // pred_check
      _
    $region15: #{_lambda_.1} parent=1 // pred_check_branch
      %31 = sbr.rel (0) target = $region17
    $region16: #{_lambda_.1} parent=1 // pred_region
      %s33 = ssub.s32 1280, 1280
      %34 = vsyncadd [#allocation6], %s33
      %s35 = sshll.u32 [#allocation5], 4
      %s36 = int_to_ptr.vmem [resolvable:$true] %s35
      %41 = dma.hbm_to_vmem [thread:$0]  %s3, 1280, %s36, [#allocation6], 128, 128, 8
    $region17: #{_lambda_.1} parent=1 // pred_fallthru
      _
    // Predicated region
    $region18: #{_lambda_.1} parent=1 // pred_check
      _
    $region19: #{_lambda_.1} parent=1 // pred_check_branch
      %43 = sbr.rel (0) target = $region21
    $region20: #{_lambda_.1} parent=1 // pred_region
      _
    $region21: #{_lambda_.1} parent=1 // pred_fallthru
      _
    // Predicated region
    $region22: #{_lambda_.1} parent=1 // pred_check
      _
    $region23: #{_lambda_.1} parent=1 // pred_check_branch
      %45 = sbr.rel (0) target = $region25
    $region24: #{_lambda_.1} parent=1 // pred_region
      %s47 = ssub.s32 2048, 2048
      %48 = vsyncadd [#allocation6], %s47
      %s49 = sshll.u32 [#allocation7], 4
      %s50 = int_to_ptr.vmem [resolvable:$true] %s49
      %55 = dma.hbm_to_vmem [thread:$0]  %s5, 2048, %s50, [#allocation6], 64, 64, 4
    $region25: #{_lambda_.1} parent=1 // pred_fallthru
      _
    // Predicated region
    $region26: #{_lambda_.1} parent=1 // pred_check
      _
    $region27: #{_lambda_.1} parent=1 // pred_check_branch
      %57 = sbr.rel (0) target = $region29
    $region28: #{_lambda_.1} parent=1 // pred_region
      _
    $region29: #{_lambda_.1} parent=1 // pred_fallthru
      _
    // Predicated region
    $region30: #{_lambda_.1} parent=1 // pred_check
      _
    $region31: #{_lambda_.1} parent=1 // pred_check_branch
      %59 = sbr.rel (0) target = $region33
    $region32: #{_lambda_.1} parent=1 // pred_region
      %60 = dma.done [#allocation4], 1280
    $region33: #{_lambda_.1} parent=1 // pred_fallthru
      _
    // Predicated region
    $region34: #{_lambda_.1} parent=1 // pred_check
      _
    $region35: #{_lambda_.1} parent=1 // pred_check_branch
      %62 = sbr.rel (0) target = $region37
    $region36: #{_lambda_.1} parent=1 // pred_region
      %63 = dma.done [#allocation6], 1280
    $region37: #{_lambda_.1} parent=1 // pred_fallthru
      _
    // Predicated region
    $region38: #{_lambda_.1} parent=1 // pred_check
      _
    $region39: #{_lambda_.1} parent=1 // pred_check_branch
      %65 = sbr.rel (0) target = $region41
    $region40: #{_lambda_.1} parent=1 // pred_region
      %66 = dma.done [#allocation6], 2048
    $region41: #{_lambda_.1} parent=1 // pred_fallthru
      _
    %p68 = scmp.eq.s32.totalorder 0, 0
    // Predicated region
    $region42: #{_lambda_.1} parent=1 // pred_check
      %p69 = pneg %p68
    $region43: #{_lambda_.1} parent=1 // pred_check_branch
      %71 = sbr.rel (%p69) target = $region45
    $region44: #{_lambda_.1} parent=1 // pred_region
      %72 = vst [vmem:[#allocation2] sm:$0xff] 0.0
      %73 = vst [vmem:[#allocation2 + $0x8] sm:$0xff] 0.0
    $region45: #{_lambda_.1} parent=1 // pred_fallthru
      _
    %v74 = vld [vmem:[%s0] sm:$0xf]
    %v75 = vld [vmem:[%s0 + $0x4] sm:$0xf]
    %v76 = vld [vmem:[#allocation3] sm:$0xff]
    %v77 = vld [vmem:[#allocation3 + $0x8] sm:$0xff]
    %v78 = vld [vmem:[#allocation3 + $0x10] sm:$0xff]
    %v79 = vld [vmem:[#allocation3 + $0x18] sm:$0xff]
    %v80 = vld [vmem:[#allocation3 + $0x20] sm:$0xff]
    %v81 = vld [vmem:[#allocation3 + $0x28] sm:$0xff]
    %v82 = vld [vmem:[#allocation3 + $0x30] sm:$0xff]
    %v83 = vld [vmem:[#allocation3 + $0x38] sm:$0xff]
    %v84 = vld [vmem:[#allocation3 + $0x40] sm:$0xff]
    %v85 = vld [vmem:[#allocation3 + $0x48] sm:$0xff]
    %v86 = vld [vmem:[%s2] sm:$0x3]
    %v88 = vlaneseq
    %v89 = vshrl.u32 %v88, 7
    %v90 = vsub.s32 0, %v89
    %v91 = vrot.slane %v86, %v90
    %v92 = vlaneseq
    %v93 = vshrl.u32 %v92, 7
    %v94 = vsub.s32 1, %v93
    %v95 = vrot.slane %v86, %v94
    %v100 = vunpack.c.l.b16 %v74
    %v101 = vunpack.c.l.b16 %v75
    %v102 = vpack.c.b16 %v101, %v100
    %v113 = vunpack.c.l.b16 %v76
    %v114 = vunpack.c.h.b16 %v76
    %v115 = vunpack.c.l.b16 %v77
    %v116 = vunpack.c.h.b16 %v77
    %v117 = vunpack.c.l.b16 %v78
    %v118 = vunpack.c.h.b16 %v78
    %v119 = vunpack.c.l.b16 %v79
    %v120 = vunpack.c.h.b16 %v79
    %v121 = vunpack.c.l.b16 %v80
    %v122 = vunpack.c.h.b16 %v80
    %v123 = vunpack.c.l.b16 %v81
    %v124 = vunpack.c.h.b16 %v81
    %v125 = vunpack.c.l.b16 %v82
    %v126 = vunpack.c.h.b16 %v82
    %v127 = vunpack.c.l.b16 %v83
    %v128 = vunpack.c.h.b16 %v83
    %v129 = vunpack.c.l.b16 %v84
    %v130 = vunpack.c.h.b16 %v84
    %v131 = vunpack.c.l.b16 %v85
    %v132 = vunpack.c.h.b16 %v85
    %v133 = vpack.c.b16 %v115, %v113
    %v134 = vpack.c.b16 %v116, %v114
    %v135 = vpack.c.b16 %v119, %v117
    %v136 = vpack.c.b16 %v120, %v118
    %v137 = vpack.c.b16 %v123, %v121
    %v138 = vpack.c.b16 %v124, %v122
    %v139 = vpack.c.b16 %v127, %v125
    %v140 = vpack.c.b16 %v128, %v126
    %v141 = vpack.c.b16 %v131, %v129
    %v142 = vpack.c.b16 %v132, %v130
    %vm153 = vcmask 654336
    %v155 = vsel %vm153, %v102, 0
    %157 = vmatprep.subr.bf16.mxu0 0
    %158 = vmatpush1.bf16.msra.mxu0 0
    %159 = vmatprep.subr.bf16.mxu0 0
    %160 = vmatpush1.bf16.msra.mxu0 0
    %161 = vmatprep.subr.bf16.mxu0 0
    %162 = vmatpush1.bf16.msra.mxu0 0
    %163 = vmatprep.subr.bf16.mxu0 %v142
    %164 = vmatpush1.bf16.msra.mxu0 %v141
    %165 = vmatprep.subr.bf16.mxu0 %v140
    %166 = vmatpush1.bf16.msra.mxu0 %v139
    %167 = vmatprep.subr.bf16.mxu0 %v138
    %168 = vmatpush1.bf16.msra.mxu0 %v137
    %169 = vmatprep.subr.bf16.mxu0 %v136
    %170 = vmatpush1.bf16.msra.mxu0 %v135
    %171 = vmatprep.subr.bf16.mxu0 %v134
    %172 = vmatpush1.bf16.msra.mxu0 %v133
    %173 = vmatprep.subr.bf16.mxu0 0
    %174 = vmatpush2.bf16.msra.mxu0 0
    %175 = vmatprep.subr.bf16.mxu0 0
    %176 = vmatpush2.bf16.msra.mxu0 0
    %177 = vmatprep.subr.bf16.mxu0 0
    %178 = vmatpush2.bf16.msra.mxu0 0
    %179 = vmatprep.subr.bf16.mxu0 0
    %180 = vmatpush2.bf16.msra.mxu0 0
    %181 = vmatprep.subr.bf16.mxu0 0
    %182 = vmatpush2.bf16.msra.mxu0 0
    %183 = vmatprep.subr.bf16.mxu0 0
    %184 = vmatpush2.bf16.msra.mxu0 0
    %185 = vmatprep.subr.bf16.mxu0 0
    %186 = vmatpush2.bf16.msra.mxu0 0
    %187 = vmatprep.subr.bf16.mxu0 0
    %188 = vmatpush2.bf16.msra.mxu0 0
    %189 = vmatprep.mubr.bf16.mxu0 0
    %190 = vmatmul.mubr.bf16.gmra.mxu0 %v155
    %v191 = vpop.f32.mrf.mxu0
    %v192 = vadd.f32 %v91, %v191
    %v193 = vpop.f32.mrf.mxu0
    %v194 = vadd.f32 %v95, %v193
    %v195 = vpop.f32.mrf.mxu0
    %v196 = vadd.f32 %v91, %v195
    %v197 = vpop.f32.mrf.mxu0
    %v198 = vadd.f32 %v95, %v197
    %199 = vdwg.mxu0
    %v200 = vld [vmem:[#allocation5] sm:$0xff]
    %v201 = vld [vmem:[#allocation5 + $0x8] sm:$0xff]
    %v202 = vld [vmem:[#allocation5 + $0x10] sm:$0xff]
    %v203 = vld [vmem:[#allocation5 + $0x18] sm:$0xff]
    %v204 = vld [vmem:[#allocation5 + $0x20] sm:$0xff]
    %v205 = vld [vmem:[#allocation5 + $0x28] sm:$0xff]
    %v206 = vld [vmem:[#allocation5 + $0x30] sm:$0xff]
    %v207 = vld [vmem:[#allocation5 + $0x38] sm:$0xff]
    %v208 = vld [vmem:[#allocation5 + $0x40] sm:$0xff]
    %v209 = vld [vmem:[#allocation5 + $0x48] sm:$0xff]
    %v210 = vld [vmem:[%s4] sm:$0x3]
    %v212 = vlaneseq
    %v213 = vshrl.u32 %v212, 7
    %v214 = vsub.s32 0, %v213
    %v215 = vrot.slane %v210, %v214
    %v216 = vlaneseq
    %v217 = vshrl.u32 %v216, 7
    %v218 = vsub.s32 1, %v217
    %v219 = vrot.slane %v210, %v218
    %v232 = vunpack.c.l.b16 %v200
    %v233 = vunpack.c.h.b16 %v200
    %v234 = vunpack.c.l.b16 %v201
    %v235 = vunpack.c.h.b16 %v201
    %v236 = vunpack.c.l.b16 %v202
    %v237 = vunpack.c.h.b16 %v202
    %v238 = vunpack.c.l.b16 %v203
    %v239 = vunpack.c.h.b16 %v203
    %v240 = vunpack.c.l.b16 %v204
    %v241 = vunpack.c.h.b16 %v204
    %v242 = vunpack.c.l.b16 %v205
    %v243 = vunpack.c.h.b16 %v205
    %v244 = vunpack.c.l.b16 %v206
    %v245 = vunpack.c.h.b16 %v206
    %v246 = vunpack.c.l.b16 %v207
    %v247 = vunpack.c.h.b16 %v207
    %v248 = vunpack.c.l.b16 %v208
    %v249 = vunpack.c.h.b16 %v208
    %v250 = vunpack.c.l.b16 %v209
    %v251 = vunpack.c.h.b16 %v209
    %v252 = vpack.c.b16 %v234, %v232
    %v253 = vpack.c.b16 %v235, %v233
    %v254 = vpack.c.b16 %v238, %v236
    %v255 = vpack.c.b16 %v239, %v237
    %v256 = vpack.c.b16 %v242, %v240
    %v257 = vpack.c.b16 %v243, %v241
    %v258 = vpack.c.b16 %v246, %v244
    %v259 = vpack.c.b16 %v247, %v245
    %v260 = vpack.c.b16 %v250, %v248
    %v261 = vpack.c.b16 %v251, %v249
    %272 = vmatprep.subr.bf16.mxu0 0
    %273 = vmatpush1.bf16.msra.mxu0 0
    %274 = vmatprep.subr.bf16.mxu0 0
    %275 = vmatpush1.bf16.msra.mxu0 0
    %276 = vmatprep.subr.bf16.mxu0 0
    %277 = vmatpush1.bf16.msra.mxu0 0
    %278 = vmatprep.subr.bf16.mxu0 %v261
    %279 = vmatpush1.bf16.msra.mxu0 %v260
    %280 = vmatprep.subr.bf16.mxu0 %v259
    %281 = vmatpush1.bf16.msra.mxu0 %v258
    %282 = vmatprep.subr.bf16.mxu0 %v257
    %283 = vmatpush1.bf16.msra.mxu0 %v256
    %284 = vmatprep.subr.bf16.mxu0 %v255
    %285 = vmatpush1.bf16.msra.mxu0 %v254
    %286 = vmatprep.subr.bf16.mxu0 %v253
    %287 = vmatpush1.bf16.msra.mxu0 %v252
    %288 = vmatprep.subr.bf16.mxu0 0
    %289 = vmatpush2.bf16.msra.mxu0 0
    %290 = vmatprep.subr.bf16.mxu0 0
    %291 = vmatpush2.bf16.msra.mxu0 0
    %292 = vmatprep.subr.bf16.mxu0 0
    %293 = vmatpush2.bf16.msra.mxu0 0
    %294 = vmatprep.subr.bf16.mxu0 0
    %295 = vmatpush2.bf16.msra.mxu0 0
    %296 = vmatprep.subr.bf16.mxu0 0
    %297 = vmatpush2.bf16.msra.mxu0 0
    %298 = vmatprep.subr.bf16.mxu0 0
    %299 = vmatpush2.bf16.msra.mxu0 0
    %300 = vmatprep.subr.bf16.mxu0 0
    %301 = vmatpush2.bf16.msra.mxu0 0
    %302 = vmatprep.subr.bf16.mxu0 0
    %303 = vmatpush2.bf16.msra.mxu0 0
    %304 = vmatprep.mubr.bf16.mxu0 0
    %305 = vmatmul.mubr.bf16.gmra.mxu0 %v155
    %v306 = vpop.f32.mrf.mxu0
    %v307 = vadd.f32 %v215, %v306
    %v308 = vpop.f32.mrf.mxu0
    %v309 = vadd.f32 %v219, %v308
    %v310 = vpop.f32.mrf.mxu0
    %v311 = vadd.f32 %v215, %v310
    %v312 = vpop.f32.mrf.mxu0
    %v313 = vadd.f32 %v219, %v312
    %314 = vdwg.mxu0
    %v315 = vxor.u32 %v307, 2147483648
    %v316 = vxor.u32 %v309, 2147483648
    %v317 = vxor.u32 %v311, 2147483648
    %v318 = vxor.u32 %v313, 2147483648
    %v319 = vmul.f32 %v315, 1.442695
    %v320 = vpow.pop %v319
    %v321 = vmul.f32 %v316, 1.442695
    %v322 = vpow.pop %v321
    %v323 = vmul.f32 %v317, 1.442695
    %v324 = vpow.pop %v323
    %v325 = vmul.f32 %v318, 1.442695
    %v326 = vpow.pop %v325
    %v327 = vadd.f32 %v320, 1.0
    %v328 = vadd.f32 %v322, 1.0
    %v329 = vadd.f32 %v324, 1.0
    %v330 = vadd.f32 %v326, 1.0
    %v331 = vrcp.pop %v327
    %v332 = vmul.f32 1.0, %v331
    %v333 = vrcp.pop %v328
    %v334 = vmul.f32 1.0, %v333
    %v335 = vrcp.pop %v329
    %v336 = vmul.f32 1.0, %v335
    %v337 = vrcp.pop %v330
    %v338 = vmul.f32 1.0, %v337
    %v339 = vmul.f32 %v307, %v332
    %v340 = vmul.f32 %v309, %v334
    %v341 = vmul.f32 %v311, %v336
    %v342 = vmul.f32 %v313, %v338
    %v343 = vmul.f32 %v192, %v339
    %v344 = vmul.f32 %v194, %v340
    %v345 = vmul.f32 %v196, %v341
    %v346 = vmul.f32 %v198, %v342
    %v347 = vld [vmem:[#allocation2] sm:$0xff]
    %v348 = vld [vmem:[#allocation2 + $0x8] sm:$0xff]
    %v349 = vpack.c.bf16 %v345, %v343
    %v350 = vpack.c.bf16 %v346, %v344
    %v351 = vld [vmem:[#allocation7] sm:$0xf]
    %v352 = vld [vmem:[#allocation7 + $0x4] sm:$0xf]
    %v353 = vld [vmem:[#allocation7 + $0x8] sm:$0xf]
    %v354 = vld [vmem:[#allocation7 + $0xc] sm:$0xf]
    %v355 = vld [vmem:[#allocation7 + $0x10] sm:$0xf]
    %v356 = vld [vmem:[#allocation7 + $0x14] sm:$0xf]
    %v357 = vld [vmem:[#allocation7 + $0x18] sm:$0xf]
    %v358 = vld [vmem:[#allocation7 + $0x1c] sm:$0xf]
    %v359 = vld [vmem:[#allocation7 + $0x20] sm:$0xf]
    %v360 = vld [vmem:[#allocation7 + $0x24] sm:$0xf]
    %v361 = vld [vmem:[#allocation7 + $0x28] sm:$0xf]
    %v362 = vld [vmem:[#allocation7 + $0x2c] sm:$0xf]
    %v363 = vld [vmem:[#allocation7 + $0x30] sm:$0xf]
    %v364 = vld [vmem:[#allocation7 + $0x34] sm:$0xf]
    %v365 = vld [vmem:[#allocation7 + $0x38] sm:$0xf]
    %v366 = vld [vmem:[#allocation7 + $0x3c] sm:$0xf]
    %v367 = vld [vmem:[#allocation7 + $0x40] sm:$0xf]
    %v368 = vld [vmem:[#allocation7 + $0x44] sm:$0xf]
    %v369 = vld [vmem:[#allocation7 + $0x48] sm:$0xf]
    %v370 = vld [vmem:[#allocation7 + $0x4c] sm:$0xf]
    %v371 = vld [vmem:[#allocation7 + $0x50] sm:$0xf]
    %v372 = vld [vmem:[#allocation7 + $0x54] sm:$0xf]
    %v373 = vld [vmem:[#allocation7 + $0x58] sm:$0xf]
    %v374 = vld [vmem:[#allocation7 + $0x5c] sm:$0xf]
    %v375 = vld [vmem:[#allocation7 + $0x60] sm:$0xf]
    %v376 = vld [vmem:[#allocation7 + $0x64] sm:$0xf]
    %v377 = vld [vmem:[#allocation7 + $0x68] sm:$0xf]
    %v378 = vld [vmem:[#allocation7 + $0x6c] sm:$0xf]
    %v379 = vld [vmem:[#allocation7 + $0x70] sm:$0xf]
    %v380 = vld [vmem:[#allocation7 + $0x74] sm:$0xf]
    %v381 = vld [vmem:[#allocation7 + $0x78] sm:$0xf]
    %v382 = vld [vmem:[#allocation7 + $0x7c] sm:$0xf]
    %v415 = vunpack.c.l.b16 %v351
    %v416 = vunpack.c.l.b16 %v352
    %v417 = vunpack.c.l.b16 %v353
    %v418 = vunpack.c.l.b16 %v354
    %v419 = vunpack.c.l.b16 %v355
    %v420 = vunpack.c.l.b16 %v356
    %v421 = vunpack.c.l.b16 %v357
    %v422 = vunpack.c.l.b16 %v358
    %v423 = vunpack.c.l.b16 %v359
    %v424 = vunpack.c.l.b16 %v360
    %v425 = vunpack.c.l.b16 %v361
    %v426 = vunpack.c.l.b16 %v362
    %v427 = vunpack.c.l.b16 %v363
    %v428 = vunpack.c.l.b16 %v364
    %v429 = vunpack.c.l.b16 %v365
    %v430 = vunpack.c.l.b16 %v366
    %v431 = vunpack.c.l.b16 %v367
    %v432 = vunpack.c.l.b16 %v368
    %v433 = vunpack.c.l.b16 %v369
    %v434 = vunpack.c.l.b16 %v370
    %v435 = vunpack.c.l.b16 %v371
    %v436 = vunpack.c.l.b16 %v372
    %v437 = vunpack.c.l.b16 %v373
    %v438 = vunpack.c.l.b16 %v374
    %v439 = vunpack.c.l.b16 %v375
    %v440 = vunpack.c.l.b16 %v376
    %v441 = vunpack.c.l.b16 %v377
    %v442 = vunpack.c.l.b16 %v378
    %v443 = vunpack.c.l.b16 %v379
    %v444 = vunpack.c.l.b16 %v380
    %v445 = vunpack.c.l.b16 %v381
    %v446 = vunpack.c.l.b16 %v382
    %v447 = vpack.c.b16 %v416, %v415
    %v448 = vpack.c.b16 %v418, %v417
    %v449 = vpack.c.b16 %v420, %v419
    %v450 = vpack.c.b16 %v422, %v421
    %v451 = vpack.c.b16 %v424, %v423
    %v452 = vpack.c.b16 %v426, %v425
    %v453 = vpack.c.b16 %v428, %v427
    %v454 = vpack.c.b16 %v430, %v429
    %v455 = vpack.c.b16 %v432, %v431
    %v456 = vpack.c.b16 %v434, %v433
    %v457 = vpack.c.b16 %v436, %v435
    %v458 = vpack.c.b16 %v438, %v437
    %v459 = vpack.c.b16 %v440, %v439
    %v460 = vpack.c.b16 %v442, %v441
    %v461 = vpack.c.b16 %v444, %v443
    %v462 = vpack.c.b16 %v446, %v445
    %479 = vmatprep.subr.bf16.mxu0 0
    %480 = vmatpush1.bf16.msra.mxu0 %v454
    %481 = vmatprep.subr.bf16.mxu0 0
    %482 = vmatpush1.bf16.msra.mxu0 %v453
    %483 = vmatprep.subr.bf16.mxu0 0
    %484 = vmatpush1.bf16.msra.mxu0 %v452
    %485 = vmatprep.subr.bf16.mxu0 0
    %486 = vmatpush1.bf16.msra.mxu0 %v451
    %487 = vmatprep.subr.bf16.mxu0 0
    %488 = vmatpush1.bf16.msra.mxu0 %v450
    %489 = vmatprep.subr.bf16.mxu0 0
    %490 = vmatpush1.bf16.msra.mxu0 %v449
    %491 = vmatprep.subr.bf16.mxu0 0
    %492 = vmatpush1.bf16.msra.mxu0 %v448
    %493 = vmatprep.subr.bf16.mxu0 0
    %494 = vmatpush1.bf16.msra.mxu0 %v447
    %495 = vmatprep.subr.bf16.mxu0 0
    %496 = vmatpush2.bf16.msra.mxu0 %v462
    %497 = vmatprep.subr.bf16.mxu0 0
    %498 = vmatpush2.bf16.msra.mxu0 %v461
    %499 = vmatprep.subr.bf16.mxu0 0
    %500 = vmatpush2.bf16.msra.mxu0 %v460
    %501 = vmatprep.subr.bf16.mxu0 0
    %502 = vmatpush2.bf16.msra.mxu0 %v459
    %503 = vmatprep.subr.bf16.mxu0 0
    %504 = vmatpush2.bf16.msra.mxu0 %v458
    %505 = vmatprep.subr.bf16.mxu0 0
    %506 = vmatpush2.bf16.msra.mxu0 %v457
    %507 = vmatprep.subr.bf16.mxu0 0
    %508 = vmatpush2.bf16.msra.mxu0 %v456
    %509 = vmatprep.subr.bf16.mxu0 0
    %510 = vmatpush2.bf16.msra.mxu0 %v455
    %511 = vmatprep.mubr.bf16.mxu0 %v350
    %512 = vmatmul.mubr.bf16.gmra.mxu0 %v349
    %v513 = vpop.f32.mrf.mxu0
    %v514 = vadd.f32 0.0, %v513
    %v515 = vpop.f32.mrf.mxu0
    %v516 = vpop.f32.mrf.mxu0
    %v517 = vadd.f32 0.0, %v516
    %v518 = vpop.f32.mrf.mxu0
    %519 = vdwg.mxu0
    %v520 = vadd.f32 %v347, %v514
    %v521 = vadd.f32 %v348, %v517
    %522 = vst [vmem:[#allocation2] sm:$0xff] %v520
    %523 = vst [vmem:[#allocation2 + $0x8] sm:$0xff] %v521
    // Predicated region
    $region46: #{_lambda_.1} parent=1 // pred_check
      %p524 = pneg %p68
    $region47: #{_lambda_.1} parent=1 // pred_check_branch
      %526 = sbr.rel (%p524) target = $region49
    $region48: #{_lambda_.1} parent=1 // pred_region
      %v527 = vld [vmem:[#allocation2] sm:$0xff]
      %v528 = vld [vmem:[#allocation2 + $0x8] sm:$0xff]
      %v529 = vld [vmem:[%s6] sm:$0x1]
      %v531 = vlaneseq
      %v532 = vshrl.u32 %v531, 7
      %v533 = vsub.s32 0, %v532
      %v534 = vrot.slane %v529, %v533
      %v536 = vadd.f32 %v527, %v534
      %v537 = vadd.f32 %v528, %v534
      %538 = vst [vmem:[%s7] sm:$0xff] %v536
      %539 = vst [vmem:[%s7 + $0x8] sm:$0xff] %v537
    $region49: #{_lambda_.1} parent=1 // pred_fallthru
      _
    // Predicated region
    $region50: #{_lambda_.1} parent=1 // pred_check
      _
    $region51: #{_lambda_.1} parent=1 // pred_check_branch
      %541 = sbr.rel (0) target = $region53
    $region52: #{_lambda_.1} parent=1 // pred_region
      _
    $region53: #{_lambda_.1} parent=1 // pred_fallthru
      _
    // Predicated region
    $region54: #{_lambda_.1} parent=1 // pred_check
      _
    $region55: #{_lambda_.1} parent=1 // pred_check_branch
      %543 = sbr.rel (0) target = $region57
    $region56: #{_lambda_.1} parent=1 // pred_region
      _
    $region57: #{_lambda_.1} parent=1 // pred_fallthru
      _
    %544 = vsyncpa [#allocation4], 1
    %545 = vsyncpa [#allocation6], 1

</llo_original>
